<compile_context>
chip_gen: v7x
topology: tpu7x:2x2x1
jax: 0.10.0
libtpu: 0.0.40
codegen_flags: <defaults>
</compile_context>

<pallas_src>
import functools

import jax
import jax.numpy as jnp
from jax.experimental import pallas as pl
from jax.experimental.pallas import tpu as pltpu


def center_loss_kernel(x_ref, lab_ref, c_ref, out_ref, *, batch_size):
    """
    x_ref:   (tb, D) float  VMEM  - feature tile for this grid step
    lab_ref: (tb, 1) int32  VMEM  - label tile for this grid step
    c_ref:   (C, D)  float  VMEM  - full center table (resident, constant idx)
    out_ref: (tb, 1) f32    VMEM  - per-row clamped squared distance
    """
    i = pl.program_id(0)
    tb = x_ref.shape[0]
    num_classes = c_ref.shape[0]

    # --- gather c[labels] with a one-hot MXU matmul (no masked row stores) ---
    labels = lab_ref[...]                                              # (tb, 1)
    class_ids = jax.lax.broadcasted_iota(jnp.int32, (tb, num_classes), 1)
    onehot = (labels == class_ids).astype(jnp.float32)                 # (tb, C)
    gathered = jnp.dot(onehot, c_ref[...].astype(jnp.float32),
                       preferred_element_type=jnp.float32)             # (tb, D)

    # --- squared distance to own center (VPU/XLU) ---
    diff = x_ref[...].astype(jnp.float32) - gathered
    dist = jnp.sum(diff * diff, axis=1, keepdims=True)                 # (tb, 1)
    # Clamp of the selected (masked-in) entries, matching torch.clamp(1e-12, 1e12).
    dist = jnp.clip(dist, 1e-12, 1.0e12)

    # Zero out rows that are batch padding (they must not contribute).
    row_ids = i * tb + jax.lax.broadcasted_iota(jnp.int32, (tb, 1), 0)
    out_ref[...] = jnp.where(row_ids < batch_size, dist, 0.0)


def center_loss(x, centers, labels, *, max_tile_rows=512):
    """x: (B, D), centers: (C, D), labels: (B,) int -> scalar f32 loss."""
    B, D = x.shape
    C, Dc = centers.shape
    assert D == Dc
    labels2d = labels.reshape(B, 1).astype(jnp.int32)

    def _round_up(a, m):
        return ((a + m - 1) // m) * m

    # Large batch tile (multiple of 8 sublanes), batch padded to a tile multiple.
    tb = min(max_tile_rows, _round_up(B, 8))
    b_pad = _round_up(B, tb)
    if b_pad != B:
        x = jnp.pad(x, ((0, b_pad - B), (0, 0)))
        labels2d = jnp.pad(labels2d, ((0, b_pad - B), (0, 0)))
    grid = (b_pad // tb,)

    kernel = functools.partial(center_loss_kernel, batch_size=B)

    # VMEM budget: double-buffered x/label/out tiles + resident center table
    # + onehot/gathered/diff temporaries, with 2x headroom.
    lane = lambda n: _round_up(n, 128)
    sub = lambda n: _round_up(n, 8)
    est_bytes = (
        2 * tb * lane(D) * 4            # x tile (double-buffered)
        + 2 * tb * 128 * 4              # label tile (lane-padded)
        + 2 * sub(C) * lane(D) * 4      # resident center table
        + 2 * tb * 128 * 4              # per-row output tile
        + 4 * tb * max(lane(C), lane(D)) * 4   # onehot / gathered / diff temps
    )
    # Default scoped VMEM (16/32 MiB) is far below physical; raise with headroom.
    # On v7x (64 MiB physical) shrink tb / move centers to HBM if this grows.
    vmem_limit = int(min(max(2 * est_bytes, 32 * 1024 * 1024), 100 * 1024 * 1024))

    per_row = pl.pallas_call(
        kernel,
        out_shape=jax.ShapeDtypeStruct((b_pad, 1), jnp.float32),
        grid_spec=pltpu.PrefetchScalarGridSpec(
            num_scalar_prefetch=0,
            grid=grid,
            in_specs=[
                pl.BlockSpec((tb, D), lambda i: (i, 0)),    # x tile
                pl.BlockSpec((tb, 1), lambda i: (i, 0)),    # label tile
                pl.BlockSpec((C, D), lambda i: (0, 0)),     # centers (resident)
            ],
            out_specs=pl.BlockSpec((tb, 1), lambda i: (i, 0)),
        ),
        compiler_params=pltpu.CompilerParams(
            # Every grid step writes a disjoint output block -> fully parallel;
            # auto-shards across TensorCores on megacore parts (v7x).
            dimension_semantics=("parallel",),
            vmem_limit_bytes=vmem_limit,
        ),
    )(x, labels2d, centers)

    # Tiny deferred reduction in the wrapper. The + (C-1)*1e-12 restores
    # PyTorch's clamp-after-mask contribution of the zeroed entries.
    return jnp.sum(per_row) / jnp.float32(B) + jnp.float32((C - 1) * 1e-12)


if __name__ == "__main__":
    # Small shapes consistent with the module. B=20 (not a multiple of 8)
    # exercises the batch-padding + row-masking path.
    batch_size = 20
    feat_dim = 32
    num_classes = 16

    key = jax.random.PRNGKey(0)
    k_x, k_c, k_l = jax.random.split(key, 3)

    x = jax.random.normal(k_x, (batch_size, feat_dim), dtype=jnp.float32)
    # Deterministic "parameter" init, mirrors torch.randn(num_classes, feat_dim)
    centers = jax.random.normal(k_c, (num_classes, feat_dim), dtype=jnp.float32)
    labels = jax.random.randint(k_l, (batch_size,), 0, num_classes, dtype=jnp.int32)

    # Pure-JAX reference mirroring the PyTorch forward (expand, mask,
    # clamp-after-mask, mean over batch).
    x_sq = jnp.sum(x ** 2, axis=1, keepdims=True)
    c_sq = jnp.sum(centers ** 2, axis=1, keepdims=True)
    distmat = x_sq + c_sq.T - 2.0 * (x @ centers.T)
    mask = (labels[:, None] == jnp.arange(num_classes)[None, :]).astype(jnp.float32)
    ref = jnp.sum(jnp.clip(distmat * mask, 1e-12, 1e12)) / batch_size

    # Default (large-tile) path: single grid step, padded batch.
    loss = center_loss(x, centers, labels)
    jax.block_until_ready(loss)
    assert jnp.allclose(loss, ref, rtol=1e-5, atol=1e-5), (loss, ref)

    # Small-tile path: multiple grid steps (exercises tiling + padding).
    loss_small = center_loss(x, centers, labels, max_tile_rows=8)
    jax.block_until_ready(loss_small)
    assert jnp.allclose(loss_small, ref, rtol=1e-5, atol=1e-5), (loss_small, ref)

    print("KERNEL_OK")
</pallas_src>

<mosaic_0001>
module attributes {stable_mosaic.version = 11 : i64} {
  func.func @center_loss_kernel(%arg0: i32, %arg1: memref<24x32xf32, #tpu.memory_space<vmem>>, %arg2: memref<24x1xi32, #tpu.memory_space<vmem>>, %arg3: memref<16x32xf32, #tpu.memory_space<vmem>>, %arg4: memref<24x1xf32, #tpu.memory_space<vmem>>) attributes {dimension_semantics = [#tpu.dimension_semantics<parallel>], iteration_bounds = array<i64: 1>, scalar_prefetch = 0 : i64, scratch_operands = 0 : i64, tpu.core_type = #tpu.core_type<tc>, window_params = [{transform_indices = @transform_0, window_bounds = array<i64: 24, 32>}, {transform_indices = @transform_1, window_bounds = array<i64: 24, 1>}, {pipeline_mode = #tpu.pipeline_mode<synchronous>, transform_indices = @transform_2, window_bounds = array<i64: 16, 32>}, {transform_indices = @transform_3, window_bounds = array<i64: 24, 1>}]} {
    %c0 = arith.constant 0 : index
    %c0_0 = arith.constant 0 : index
    %0 = vector.load %arg2[%c0, %c0_0] : memref<24x1xi32, #tpu.memory_space<vmem>>, vector<24x1xi32>
    %1 = tpu.iota {dimensions = array<i32: 1>} : vector<24x16xi32>
    %2 = vector.broadcast %0 : vector<24x1xi32> to vector<24x16xi32>
    %3 = arith.cmpi eq, %2, %1 : vector<24x16xi32>
    %4 = arith.extui %3 : vector<24x16xi1> to vector<24x16xi32>
    %5 = arith.sitofp %4 : vector<24x16xi32> to vector<24x16xf32>
    %c0_1 = arith.constant 0 : index
    %c0_2 = arith.constant 0 : index
    %6 = vector.load %arg3[%c0_1, %c0_2] : memref<16x32xf32, #tpu.memory_space<vmem>>, vector<16x32xf32>
    %cst = arith.constant dense<0.000000e+00> : vector<24x32xf32>
    %7 = tpu.matmul %5, %6, %cst {dimension_numbers = #tpu.dot_dimension_numbers<[1], [0], [0], [1], [0, 0, 1, 1], [], []>} : vector<24x16xf32>, vector<16x32xf32>, vector<24x32xf32> -> vector<24x32xf32>
    %c0_3 = arith.constant 0 : index
    %c0_4 = arith.constant 0 : index
    %8 = vector.load %arg1[%c0_3, %c0_4] : memref<24x32xf32, #tpu.memory_space<vmem>>, vector<24x32xf32>
    %9 = arith.subf %8, %7 : vector<24x32xf32>
    %10 = arith.mulf %9, %9 : vector<24x32xf32>
    %cst_5 = arith.constant dense<0.000000e+00> : vector<24xf32>
    %11 = vector.multi_reduction <add>, %10, %cst_5 [1] : vector<24x32xf32> to vector<24xf32>
    %12 = vector.shape_cast %11 : vector<24xf32> to vector<24x1xf32>
    %cst_6 = arith.constant 9.99999996E-13 : f32
    %cst_7 = arith.constant 9.99999995E+11 : f32
    %13 = vector.broadcast %cst_6 : f32 to vector<24x1xf32>
    %14 = arith.maximumf %13, %12 : vector<24x1xf32>
    %15 = vector.broadcast %cst_7 : f32 to vector<24x1xf32>
    %16 = arith.minimumf %15, %14 : vector<24x1xf32>
    %c24_i32 = arith.constant 24 : i32
    %17 = arith.muli %arg0, %c24_i32 : i32
    %18 = tpu.iota {dimensions = array<i32: 0>} : vector<24x1xi32>
    %19 = vector.broadcast %17 : i32 to vector<24x1xi32>
    %20 = arith.addi %19, %18 : vector<24x1xi32>
    %c20_i32 = arith.constant 20 : i32
    %21 = vector.broadcast %c20_i32 : i32 to vector<24x1xi32>
    %22 = arith.cmpi slt, %20, %21 : vector<24x1xi32>
    %cst_8 = arith.constant 0.000000e+00 : f32
    %23 = vector.broadcast %cst_8 : f32 to vector<24x1xf32>
    %24 = arith.select %22, %16, %23 : vector<24x1xi1>, vector<24x1xf32>
    %c0_9 = arith.constant 0 : index
    %c0_10 = arith.constant 0 : index
    %25 = vector.load %arg4[%c0_9, %c0_10] : memref<24x1xf32, #tpu.memory_space<vmem>>, vector<24x1xf32>
    tpu.vector_store %arg4[%c0_9, %c0_10], %24 {strides = array<i32>} : memref<24x1xf32, #tpu.memory_space<vmem>>, vector<24x1xf32>,
    return
  }
  func.func @transform_0(%arg0: i32) -> (i32, i32) {
    %c0_i32 = arith.constant 0 : i32
    %c0_i32_0 = arith.constant 0 : i32
    return %arg0, %c0_i32 : i32, i32
  }
  func.func @transform_1(%arg0: i32) -> (i32, i32) {
    %c0_i32 = arith.constant 0 : i32
    %c0_i32_0 = arith.constant 0 : i32
    return %arg0, %c0_i32 : i32, i32
  }
  func.func @transform_2(%arg0: i32) -> (i32, i32) {
    %c0_i32 = arith.constant 0 : i32
    %c0_i32_0 = arith.constant 0 : i32
    %c0_i32_1 = arith.constant 0 : i32
    return %c0_i32, %c0_i32_0 : i32, i32
  }
  func.func @transform_3(%arg0: i32) -> (i32, i32) {
    %c0_i32 = arith.constant 0 : i32
    %c0_i32_0 = arith.constant 0 : i32
    return %arg0, %c0_i32 : i32, i32
  }
}

</mosaic_0001>

<llo_original>
// kernel: tpu_custom_call.1
$region0: #{tpu_custom_call.1}
  #allocation0 [shape = 'u32[]', space=smem, size = 0x4, offset = 0x4, fixed_abs, tag = 'smem constant byte address 0x4 - core index']
  #allocation1 [shape = 'u32[144,128]{1,0:T(1,128)}', space=vmem, size = 0x12000, scoped, tag = 'internal scratch']
  %s0 = inlined_call_operand.vmem [shape: f32[24,32], index: 0, kind: input, shape index: {}]
  %s1 = inlined_call_operand.vmem [shape: s32[24,1], index: 1, kind: input, shape index: {}]
  %s2 = inlined_call_operand.hbm [shape: f32[16,32], index: 2, kind: input, shape index: {}]
  %s3 = inlined_call_operand.vmem [shape: f32[24,1], index: 3, kind: output, shape index: {}]
  %s4 = sld [smem:[#allocation0]]
  $region26: #{tpu_custom_call.1} parent=0
    _
  %s6 = ssub.s32 1, %s4
  %s7 = scalar_select 0, %s6, %s4
  $region1: #{tpu_custom_call.1} parent=0
    #allocation2 [shape = 'u8[8192]{0}', space=vmem, size = 0x2000, scoped, tag = 'input window, operand 2, single buffered']
    #allocation3 [shape = 's32[1]{0}', space=sflag, size = 0x4, scoped, tag = 'scoped memory for tpu_custom_call.1']
    %8 = vsyncpa [#allocation3], 0
    // Predicated region
    $region2: #{tpu_custom_call.1} parent=1 // pred_check
      _
    $region3: #{tpu_custom_call.1} parent=1 // pred_check_branch
      %10 = sbr.rel (0) target = $region5
    $region4: #{tpu_custom_call.1} parent=1 // pred_region
      _
    $region5: #{tpu_custom_call.1} parent=1 // pred_fallthru
      _
    // Predicated region
    $region6: #{tpu_custom_call.1} parent=1 // pred_check
      _
    $region7: #{tpu_custom_call.1} parent=1 // pred_check_branch
      %12 = sbr.rel (0) target = $region9
    $region8: #{tpu_custom_call.1} parent=1 // pred_region
      _
    $region9: #{tpu_custom_call.1} parent=1 // pred_fallthru
      _
    // Predicated region
    $region10: #{tpu_custom_call.1} parent=1 // pred_check
      _
    $region11: #{tpu_custom_call.1} parent=1 // pred_check_branch
      %14 = sbr.rel (0) target = $region13
    $region12: #{tpu_custom_call.1} parent=1 // pred_region
      %s16 = ssub.s32 256, 256
      %17 = vsyncadd [#allocation3], %s16
      %s18 = sshll.u32 [#allocation2], 4
      %s19 = int_to_ptr.vmem [resolvable:$true] %s18
      %24 = dma.hbm_to_vmem [thread:$0]  %s2, 256, %s19, [#allocation3], 128, 128, 8
    $region13: #{tpu_custom_call.1} parent=1 // pred_fallthru
      _
    // Predicated region
    $region14: #{tpu_custom_call.1} parent=1 // pred_check
      _
    $region15: #{tpu_custom_call.1} parent=1 // pred_check_branch
      %26 = sbr.rel (0) target = $region17
    $region16: #{tpu_custom_call.1} parent=1 // pred_region
      %27 = dma.done [#allocation3], 256
    $region17: #{tpu_custom_call.1} parent=1 // pred_fallthru
      _
    %v28 = vld [vmem:[%s1] sm:$0xff]
    %v29 = vld [vmem:[%s1 + $0x8] sm:$0xff]
    %v30 = vld [vmem:[%s1 + $0x10] sm:$0xff]
    %v31 = vlaneseq
    %v32 = vand.u32 %v31, 127
    %33 = vset.pattern.permute.xlu0 0
    %34 = vperm.xlu0 %33, %v28
    %v35 = vpop.permute.xlu0 %34
    %36 = vset.pattern.permute.xlu0 0
    %37 = vperm.xlu0 %36, %v29
    %v38 = vpop.permute.xlu0 %37
    %39 = vset.pattern.permute.xlu0 0
    %40 = vperm.xlu0 %39, %v30
    %v41 = vpop.permute.xlu0 %40
    %vm42 = vcmp.eq.s32.totalorder %v35, %v32
    %vm43 = vcmp.eq.s32.totalorder %v38, %v32
    %vm44 = vcmp.eq.s32.totalorder %v41, %v32
    %v45 = vsel %vm42, 1, 0
    %v46 = vsel %vm43, 1, 0
    %v47 = vsel %vm44, 1, 0
    %v48 = vcvt.s32.f32 %v45
    %v49 = vcvt.s32.f32 %v46
    %v50 = vcvt.s32.f32 %v47
    %v51 = vld [vmem:[#allocation2] sm:$0xff]
    %v52 = vld [vmem:[#allocation2 + $0x8] sm:$0xff]
    %vm53 = vcmask 130048
    %v55 = vsel %vm53, %v48, 0
    %v58 = vsel %vm53, %v49, 0
    %v61 = vsel %vm53, %v50, 0
    %63 = vmatprep.subr.mxu0 0.0
    %64 = vmatpush1.msra.mxu0 %v51
    %65 = vmatprep.subr.mxu0 0.0
    %66 = vmatpush1.msra.mxu0 %v52
    %67 = vmatprep.subr.mxu0 0.0
    %68 = vmatpush1.msra.mxu0 0.0
    %69 = vmatprep.subr.mxu0 0.0
    %70 = vmatpush1.msra.mxu0 0.0
    %71 = vmatprep.subr.mxu0 0.0
    %72 = vmatpush1.msra.mxu0 0.0
    %73 = vmatprep.subr.mxu0 0.0
    %74 = vmatpush1.msra.mxu0 0.0
    %75 = vmatprep.subr.mxu0 0.0
    %76 = vmatpush1.msra.mxu0 0.0
    %77 = vmatprep.subr.mxu0 0.0
    %78 = vmatpush1.msra.mxu0 0.0
    %79 = vmatprep.subr.mxu0 0.0
    %80 = vmatpush1.msra.mxu0 0.0
    %81 = vmatprep.subr.mxu0 0.0
    %82 = vmatpush1.msra.mxu0 0.0
    %83 = vmatprep.subr.mxu0 0.0
    %84 = vmatpush1.msra.mxu0 0.0
    %85 = vmatprep.subr.mxu0 0.0
    %86 = vmatpush1.msra.mxu0 0.0
    %87 = vmatprep.subr.mxu0 0.0
    %88 = vmatpush1.msra.mxu0 0.0
    %89 = vmatprep.subr.mxu0 0.0
    %90 = vmatpush1.msra.mxu0 0.0
    %91 = vmatprep.subr.mxu0 0.0
    %92 = vmatpush1.msra.mxu0 0.0
    %93 = vmatprep.subr.mxu0 0.0
    %94 = vmatpush1.msra.mxu0 0.0
    %95 = vmatprep.subr.mxu0 0.0
    %96 = vmatpush1.msra.mxu0 0.0
    %97 = vmatprep.subr.mxu0 0.0
    %98 = vmatpush1.msra.mxu0 0.0
    %99 = vmatprep.subr.mxu0 0.0
    %100 = vmatpush1.msra.mxu0 0.0
    %101 = vmatprep.subr.mxu0 0.0
    %102 = vmatpush1.msra.mxu0 0.0
    %103 = vmatprep.subr.mxu0 0.0
    %104 = vmatpush1.msra.mxu0 0.0
    %105 = vmatprep.subr.mxu0 0.0
    %106 = vmatpush1.msra.mxu0 0.0
    %107 = vmatprep.subr.mxu0 0.0
    %108 = vmatpush1.msra.mxu0 0.0
    %109 = vmatprep.subr.mxu0 0.0
    %110 = vmatpush1.msra.mxu0 0.0
    %111 = vmatprep.subr.mxu0 0.0
    %112 = vmatpush1.msra.mxu0 0.0
    %113 = vmatprep.subr.mxu0 0.0
    %114 = vmatpush1.msra.mxu0 0.0
    %115 = vmatprep.subr.mxu0 0.0
    %116 = vmatpush1.msra.mxu0 0.0
    %117 = vmatprep.subr.mxu0 0.0
    %118 = vmatpush1.msra.mxu0 0.0
    %119 = vmatprep.subr.mxu0 0.0
    %120 = vmatpush1.msra.mxu0 0.0
    %121 = vmatprep.subr.mxu0 0.0
    %122 = vmatpush1.msra.mxu0 0.0
    %123 = vmatprep.subr.mxu0 0.0
    %124 = vmatpush1.msra.mxu0 0.0
    %125 = vmatprep.subr.mxu0 0.0
    %126 = vmatpush1.msra.mxu0 0.0
    %127 = vmatprep.mubr.f32.mxu0 0.0
    %128 = vmatmul.mubr.f32.gmra.mrb[0].mxu0 %v55
    %v129 = vpop.f32.mrb[0].mxu0
    %v130 = vadd.f32 0.0, %v129
    %v131 = vpop.f32.mrb[0].mxu0
    %132 = vmatprep.mubr.f32.mxu0 0.0
    %133 = vmatmul.mubr.f32.gmra.mrb[0].mxu0 %v58
    %v134 = vpop.f32.mrb[0].mxu0
    %v135 = vadd.f32 0.0, %v134
    %v136 = vpop.f32.mrb[0].mxu0
    %137 = vmatprep.mubr.f32.mxu0 0.0
    %138 = vmatmul.mubr.f32.gmra.mrb[0].mxu0 %v61
    %v139 = vpop.f32.mrb[0].mxu0
    %v140 = vadd.f32 0.0, %v139
    %v141 = vpop.f32.mrb[0].mxu0
    %142 = vdwg.mxu0
    %v143 = vld [vmem:[%s0] sm:$0xff]
    %v144 = vld [vmem:[%s0 + $0x8] sm:$0xff]
    %v145 = vld [vmem:[%s0 + $0x10] sm:$0xff]
    %v146 = vsub.f32 %v143, %v130
    %v147 = vsub.f32 %v144, %v135
    %v148 = vsub.f32 %v145, %v140
    %v149 = vmul.f32 %v146, %v146
    %v150 = vmul.f32 %v147, %v147
    %v151 = vmul.f32 %v148, %v148
    %vm152 = vcmask 261120
    %v153 = vsel %vm152, %v149, 0.0
    %154 = vadd.xlane.f32.xlu0 %v153
    %v155 = vpop.xlane.xlu0 %154
    %v156 = vsel %vm152, %v150, 0.0
    %157 = vadd.xlane.f32.xlu0 %v156
    %v158 = vpop.xlane.xlu0 %157
    %v159 = vsel %vm152, %v151, 0.0
    %160 = vadd.xlane.f32.xlu0 %v159
    %v161 = vpop.xlane.xlu0 %160
    %v162 = vmax.f32 %v155, 1e-12
    %v163 = vmax.f32 %v158, 1e-12
    %v164 = vmax.f32 %v161, 1e-12
    %v165 = vmin.f32 %v162, 1e+12
    %v166 = vmin.f32 %v163, 1e+12
    %v167 = vmin.f32 %v164, 1e+12
    %s168 = smul.u32 0, 24
    %v169 = vlaneseq
    %v170 = vshrl.u32 %v169, 7
    %v171 = vadd.s32 %v170, 8
    %v172 = vadd.s32 %v170, 16
    %v173 = vstv %s168
    %v174 = vadd.s32 %v173, %v170
    %v175 = vadd.s32 %v173, %v171
    %v176 = vadd.s32 %v173, %v172
    %vm177 = vcmp.lt.s32.totalorder %v174, 20
    %vm178 = vcmp.lt.s32.totalorder %v175, 20
    %vm179 = vcmp.lt.s32.totalorder %v176, 20
    %v180 = vsel %vm177, %v165, 0.0
    %v181 = vsel %vm178, %v166, 0.0
    %v182 = vsel %vm179, %v167, 0.0
    %vm183 = vcmask 7168
    %184 = vst.msk [vmem:[%s3] sm:$0xff] %vm183, %v180
    %185 = vst.msk [vmem:[%s3 + $0x8] sm:$0xff] %vm183, %v181
    %186 = vst.msk [vmem:[%s3 + $0x10] sm:$0xff] %vm183, %v182
    // Predicated region
    $region18: #{tpu_custom_call.1} parent=1 // pred_check
      _
    $region19: #{tpu_custom_call.1} parent=1 // pred_check_branch
      %188 = sbr.rel (0) target = $region21
    $region20: #{tpu_custom_call.1} parent=1 // pred_region
      _
    $region21: #{tpu_custom_call.1} parent=1 // pred_fallthru
      _
    // Predicated region
    $region22: #{tpu_custom_call.1} parent=1 // pred_check
      _
    $region23: #{tpu_custom_call.1} parent=1 // pred_check_branch
      %190 = sbr.rel (0) target = $region25
    $region24: #{tpu_custom_call.1} parent=1 // pred_region
      _
    $region25: #{tpu_custom_call.1} parent=1 // pred_fallthru
      _
    %191 = vsyncpa [#allocation3], 1

</llo_original>
